<compile_context>
chip_gen: v6e
topology: v6e:2x2x1
jax: 0.10.0
libtpu: 0.0.40
codegen_flags: <defaults>
</compile_context>

<pallas_src>
import jax
import jax.numpy as jnp
from jax.experimental import pallas as pl
from jax.experimental.pallas import tpu as pltpu


def _mlp_binary_kernel(x_ref, w1_ref, b1_ref, w2_ref, b2_ref, y_ref):
    # x_ref: (TM, D)   w1_ref: (D, H)   b1_ref: (1, H)   w2_ref: (1, H)
    # b2_ref: (1, 1) in SMEM            y_ref: (1, TM)  <- lane-dense output row
    h = jnp.dot(x_ref[...], w1_ref[...],
                preferred_element_type=jnp.float32)          # (TM, H) f32 acc
    h = jnp.maximum(h + b1_ref[...], 0.0)                    # bias + ReLU (VPU)
    # linear2 has a single output column: a VPU multiply against the broadcast
    # (1, H) w2 row + an XLU lane reduction beats an N=1 MXU matmul on all gens.
    z = jnp.sum(h * w2_ref[...], axis=-1, keepdims=True) + b2_ref[0, 0]  # (TM,1)
    # Relayout the column to a lane-dense row BEFORE sigmoid so the EUP pushes
    # TM/128 full vregs and the store is an unmasked 128-lane vst.
    z_row = z.reshape(1, -1)                                  # (1, TM)
    y_ref[...] = jax.nn.sigmoid(z_row).astype(y_ref.dtype)


def neural_net_binary_forward(x, w1, b1, w2, b2, *,
                              target_tile_bytes=4 << 20,     # ~4 MiB of x / step
                              vmem_budget_bytes=48 << 20):    # per-TC, v7x-safe
    """x: (B, D); w1: (D, H); b1: (1, H); w2: (H, 1); b2: (1, 1).

    x / w1 may be float32 or bfloat16 (bf16 halves the dominant HBM stream on
    v6e/v7x); accumulation is float32 either way. Output is float32 (B, 1).
    """
    B, D = x.shape
    H = w1.shape[1]
    # Guard the hidden_size == input_size constraint inherited from the
    # PyTorch module: linear2's in_features must match the hidden width.
    assert w2.shape == (H, 1), "linear2 in_features must equal hidden width"
    assert b1.shape == (1, H) and b2.shape == (1, 1)

    w2_row = w2.reshape(1, H).astype(jnp.float32)   # row layout -> VPU broadcast
    b1 = b1.astype(jnp.float32)
    b2 = b2.astype(jnp.float32)

    # ---- Batch tile: size by bytes, then fit the per-TC VMEM budget ----------
    x_itemsize = x.dtype.itemsize
    bytes_per_row = max(1, D * x_itemsize)
    tm = max(8, target_tile_bytes // bytes_per_row)
    tm = min(tm, B)
    if tm >= 128:
        tm = (tm // 128) * 128          # keep the output row lane-dense
    else:
        tm = ((tm + 7) // 8) * 8        # at least sublane-aligned

    resident_bytes = D * H * 4 + 2 * H * 4 + 4 * 8 * 128     # w1, b1, w2 (+slack)

    def _footprint(t):
        return (resident_bytes
                + 2 * t * D * x_itemsize      # double-buffered x tiles
                + 2 * t * 4)                  # double-buffered (1, t) output rows

    while _footprint(tm) > vmem_budget_bytes and tm > 128:
        tm = max(128, ((tm // 2) // 128) * 128)

    n_tiles = pl.cdiv(B, tm)            # ragged last block; no jnp.pad HBM copy
    vmem_limit = int(min(60 << 20, max(32 << 20, 2 * _footprint(tm))))

    flops = 2 * B * D * H + 4 * B * H + B
    bytes_accessed = (B * D * x_itemsize + D * H * w1.dtype.itemsize
                      + 2 * H * 4 + 4 + B * 4)

    out = pl.pallas_call(
        _mlp_binary_kernel,
        out_shape=jax.ShapeDtypeStruct((n_tiles, tm), jnp.float32),
        grid_spec=pltpu.PrefetchScalarGridSpec(
            num_scalar_prefetch=0,
            grid=(n_tiles,),
            in_specs=[
                # x: streamed (tm, D) tiles, double-buffered by Pallas.
                # TODO(synk): add pipeline_mode=pl.Buffered(3) here only if a
                # trace still shows exposed x DMA after the byte-sized tiles.
                pl.BlockSpec((tm, D), lambda i: (i, 0)),
                pl.BlockSpec((D, H), lambda i: (0, 0)),   # w1: VMEM-resident
                pl.BlockSpec((1, H), lambda i: (0, 0)),   # b1: VMEM-resident
                pl.BlockSpec((1, H), lambda i: (0, 0)),   # w2 row: resident
                pl.BlockSpec(memory_space=pltpu.MemorySpace.SMEM),  # b2 scalar
            ],
            # Lane-dense (1, tm) output rows -> unmasked 128-lane stores.
            out_specs=pl.BlockSpec((1, tm), lambda i: (i, 0)),
        ),
        compiler_params=pltpu.CompilerParams(
            dimension_semantics=("parallel",),   # shard batch loop over 2 TCs (v7x)
            vmem_limit_bytes=vmem_limit,
        ),
        cost_estimate=pl.CostEstimate(
            flops=flops, transcendentals=B, bytes_accessed=bytes_accessed),
    )(x, w1, b1, w2_row, b2)

    # Lane-dense slab -> (B, 1); the tail rows of the ragged last block are
    # meaningless (computed from undefined reads) and are sliced off here.
    return out.reshape(n_tiles * tm)[:B].reshape(B, 1)


def init_params(key, input_size, hidden_size):
    """Deterministic PyTorch-style init: U(-1/sqrt(fan_in), 1/sqrt(fan_in))."""
    k1, k2, k3, k4 = jax.random.split(key, 4)
    bound1 = 1.0 / jnp.sqrt(input_size)
    # stored transposed: (in, out)
    w1 = jax.random.uniform(k1, (input_size, hidden_size),
                            minval=-bound1, maxval=bound1, dtype=jnp.float32)
    b1 = jax.random.uniform(k2, (1, hidden_size),
                            minval=-bound1, maxval=bound1, dtype=jnp.float32)
    # linear2 = nn.Linear(input_size, 1) -> torch weight (1, input_size),
    # stored here as (input_size, 1)
    bound2 = 1.0 / jnp.sqrt(input_size)
    w2 = jax.random.uniform(k3, (input_size, 1),
                            minval=-bound2, maxval=bound2, dtype=jnp.float32)
    b2 = jax.random.uniform(k4, (1, 1),
                            minval=-bound2, maxval=bound2, dtype=jnp.float32)
    return w1, b1, w2, b2


def _reference(x, w1, b1, w2, b2):
    return jax.nn.sigmoid(jnp.maximum(x @ w1 + b1, 0.0) @ w2 + b2)


if __name__ == "__main__":
    # hidden_size must equal input_size for the reference forward to be valid.
    input_size = hidden_size = 32
    key = jax.random.PRNGKey(0)
    kx1, kx2, kp = jax.random.split(key, 3)
    w1, b1, w2, b2 = init_params(kp, input_size, hidden_size)

    # Test 1: tiny batch -> single grid point, output block equals full dims.
    x_small = jax.random.normal(kx1, (8, input_size), dtype=jnp.float32)
    y_small = jax.block_until_ready(
        neural_net_binary_forward(x_small, w1, b1, w2, b2))
    ref_small = _reference(x_small, w1, b1, w2, b2)
    assert y_small.shape == (8, 1)
    assert jnp.allclose(y_small, ref_small, atol=1e-5, rtol=1e-5)

    # Test 2: batch larger than the tile -> multi-step grid with a ragged last
    # block (no jnp.pad), weights held resident, lane-dense output slab.
    x_big = jax.random.normal(kx2, (200, input_size), dtype=jnp.float32)
    y_big = jax.block_until_ready(
        neural_net_binary_forward(x_big, w1, b1, w2, b2))
    ref_big = _reference(x_big, w1, b1, w2, b2)
    assert y_big.shape == (200, 1)
    assert jnp.allclose(y_big, ref_big, atol=1e-5, rtol=1e-5)

    # Test 3: bf16 x / w1 (v6e/v7x HBM-traffic optimization), f32 accumulation.
    x_bf = x_big.astype(jnp.bfloat16)
    w1_bf = w1.astype(jnp.bfloat16)
    y_bf = jax.block_until_ready(
        neural_net_binary_forward(x_bf, w1_bf, b1, w2, b2))
    ref_bf = _reference(x_bf.astype(jnp.float32), w1_bf.astype(jnp.float32),
                        b1, w2, b2)
    assert y_bf.shape == (200, 1)
    assert jnp.allclose(y_bf, ref_bf, atol=2e-2, rtol=2e-2)

    print("KERNEL_OK")
</pallas_src>

<mosaic_0001>
module attributes {stable_mosaic.version = 11 : i64} {
  func.func @_mlp_binary_kernel(%arg0: i32, %arg1: memref<8x32xf32, #tpu.memory_space<vmem>>, %arg2: memref<32x32xf32, #tpu.memory_space<vmem>>, %arg3: memref<1x32xf32, #tpu.memory_space<vmem>>, %arg4: memref<1x32xf32, #tpu.memory_space<vmem>>, %arg5: memref<1x1xf32, #tpu.memory_space<smem>>, %arg6: memref<1x8xf32, #tpu.memory_space<vmem>>) attributes {dimension_semantics = [#tpu.dimension_semantics<parallel>], iteration_bounds = array<i64: 1>, scalar_prefetch = 0 : i64, scratch_operands = 0 : i64, tpu.core_type = #tpu.core_type<tc>, window_params = [{transform_indices = @transform_0, window_bounds = array<i64: 8, 32>}, {pipeline_mode = #tpu.pipeline_mode<synchronous>, transform_indices = @transform_1, window_bounds = array<i64: 32, 32>}, {pipeline_mode = #tpu.pipeline_mode<synchronous>, transform_indices = @transform_2, window_bounds = array<i64: 1, 32>}, {pipeline_mode = #tpu.pipeline_mode<synchronous>, transform_indices = @transform_3, window_bounds = array<i64: 1, 32>}, {transform_indices = @transform_4, window_bounds = array<i64: 1, 1>}, {transform_indices = @transform_5, window_bounds = array<i64: 1, 8>}]} {
    %c0 = arith.constant 0 : index
    %c0_0 = arith.constant 0 : index
    %0 = vector.load %arg1[%c0, %c0_0] : memref<8x32xf32, #tpu.memory_space<vmem>>, vector<8x32xf32>
    %c0_1 = arith.constant 0 : index
    %c0_2 = arith.constant 0 : index
    %1 = vector.load %arg2[%c0_1, %c0_2] : memref<32x32xf32, #tpu.memory_space<vmem>>, vector<32x32xf32>
    %cst = arith.constant dense<0.000000e+00> : vector<8x32xf32>
    %2 = tpu.matmul %0, %1, %cst {dimension_numbers = #tpu.dot_dimension_numbers<[1], [0], [0], [1], [0, 0, 1, 1], [], []>} : vector<8x32xf32>, vector<32x32xf32>, vector<8x32xf32> -> vector<8x32xf32>
    %c0_3 = arith.constant 0 : index
    %c0_4 = arith.constant 0 : index
    %3 = vector.load %arg3[%c0_3, %c0_4] : memref<1x32xf32, #tpu.memory_space<vmem>>, vector<1x32xf32>
    %4 = vector.broadcast %3 : vector<1x32xf32> to vector<8x32xf32>
    %5 = arith.addf %2, %4 : vector<8x32xf32>
    %cst_5 = arith.constant 0.000000e+00 : f32
    %6 = vector.broadcast %cst_5 : f32 to vector<8x32xf32>
    %7 = arith.maximumf %5, %6 : vector<8x32xf32>
    %c0_6 = arith.constant 0 : index
    %c0_7 = arith.constant 0 : index
    %8 = vector.load %arg4[%c0_6, %c0_7] : memref<1x32xf32, #tpu.memory_space<vmem>>, vector<1x32xf32>
    %9 = vector.broadcast %8 : vector<1x32xf32> to vector<8x32xf32>
    %10 = arith.mulf %7, %9 : vector<8x32xf32>
    %cst_8 = arith.constant dense<0.000000e+00> : vector<8xf32>
    %11 = vector.multi_reduction <add>, %10, %cst_8 [1] : vector<8x32xf32> to vector<8xf32>
    %12 = vector.shape_cast %11 : vector<8xf32> to vector<8x1xf32>
    %c0_9 = arith.constant 0 : index
    %c0_10 = arith.constant 0 : index
    %13 = memref.load %arg5[%c0_9, %c0_10] : memref<1x1xf32, #tpu.memory_space<smem>>
    %14 = vector.broadcast %13 : f32 to vector<8x1xf32>
    %15 = arith.addf %12, %14 : vector<8x1xf32>
    %16 = vector.shape_cast %15 : vector<8x1xf32> to vector<1x8xf32>
    %17 = arith.negf %16 : vector<1x8xf32>
    %18 = math.exp %17 : vector<1x8xf32>
    %cst_11 = arith.constant 1.000000e+00 : f32
    %19 = vector.broadcast %cst_11 : f32 to vector<1x8xf32>
    %20 = arith.addf %19, %18 : vector<1x8xf32>
    %21 = arith.divf %19, %20 : vector<1x8xf32>
    %c0_12 = arith.constant 0 : index
    %c0_13 = arith.constant 0 : index
    %22 = vector.load %arg6[%c0_12, %c0_13] : memref<1x8xf32, #tpu.memory_space<vmem>>, vector<1x8xf32>
    tpu.vector_store %arg6[%c0_12, %c0_13], %21 {strides = array<i32>} : memref<1x8xf32, #tpu.memory_space<vmem>>, vector<1x8xf32>,
    return
  }
  func.func @transform_0(%arg0: i32) -> (i32, i32) {
    %c0_i32 = arith.constant 0 : i32
    %c0_i32_0 = arith.constant 0 : i32
    return %arg0, %c0_i32 : i32, i32
  }
  func.func @transform_1(%arg0: i32) -> (i32, i32) {
    %c0_i32 = arith.constant 0 : i32
    %c0_i32_0 = arith.constant 0 : i32
    %c0_i32_1 = arith.constant 0 : i32
    return %c0_i32, %c0_i32_0 : i32, i32
  }
  func.func @transform_2(%arg0: i32) -> (i32, i32) {
    %c0_i32 = arith.constant 0 : i32
    %c0_i32_0 = arith.constant 0 : i32
    %c0_i32_1 = arith.constant 0 : i32
    return %c0_i32, %c0_i32_0 : i32, i32
  }
  func.func @transform_3(%arg0: i32) -> (i32, i32) {
    %c0_i32 = arith.constant 0 : i32
    %c0_i32_0 = arith.constant 0 : i32
    %c0_i32_1 = arith.constant 0 : i32
    return %c0_i32, %c0_i32_0 : i32, i32
  }
  func.func @transform_4(%arg0: i32) -> (i32, i32) {
    %c0_i32 = arith.constant 0 : i32
    %c0_i32_0 = arith.constant 0 : i32
    %c0_i32_1 = arith.constant 0 : i32
    return %c0_i32, %c0_i32_0 : i32, i32
  }
  func.func @transform_5(%arg0: i32) -> (i32, i32) {
    %c0_i32 = arith.constant 0 : i32
    %c0_i32_0 = arith.constant 0 : i32
    return %arg0, %c0_i32 : i32, i32
  }
}

</mosaic_0001>

<llo_original>
// kernel: tpu_custom_call.1
$region0: #{tpu_custom_call.1}
  #allocation0 [shape = 'u32[]', space=smem, size = 0x4, offset = 0x4, fixed_abs, tag = 'smem constant byte address 0x4 - core index']
  #allocation1 [shape = 'u32[144,128]{1,0:T(1,128)}', space=vmem, size = 0x12000, scoped, tag = 'internal scratch']
  #allocation2 [shape = 'f32[1,1]{1,0:T(1,128)S(6)}', space=smem, size = 0x200, scoped, tag = 'scoped memory for tpu_custom_call.1']
  %s0 = inlined_call_operand.hbm [shape: f32[8,32], index: 0, kind: input, shape index: {}]
  %s1 = inlined_call_operand.hbm [shape: f32[32,32], index: 1, kind: input, shape index: {}]
  %s2 = inlined_call_operand.vmem [shape: f32[1,32], index: 2, kind: input, shape index: {}]
  %s3 = inlined_call_operand.vmem [shape: f32[1,32], index: 3, kind: input, shape index: {}]
  %s4 = inlined_call_operand.<no memory space> [shape: f32[1,1], index: 4, kind: input, shape index: {}]
  %s5 = inlined_call_operand.hbm [shape: f32[1,8], index: 5, kind: output, shape index: {}]
  %s6 = sld [smem:[#allocation0]]
  $region38: #{tpu_custom_call.1} parent=0
    _
  %s8 = ssub.s32 1, %s6
  %s9 = scalar_select 0, %s8, %s6
  %10 = sst [smem:[#allocation2]] %s4
  $region1: #{tpu_custom_call.1} parent=0
    #allocation3 [shape = 'u8[4096]{0}', space=vmem, size = 0x1000, scoped, tag = 'input window, operand 0, single buffered']
    #allocation4 [shape = 's32[1]{0}', space=sflag, size = 0x4, scoped, tag = 'scoped memory for tpu_custom_call.1']
    #allocation5 [shape = 's32[1]{0}', space=sflag, size = 0x4, scoped, tag = 'scoped memory for tpu_custom_call.1']
    #allocation6 [shape = 'u8[16384]{0}', space=vmem, size = 0x4000, scoped, tag = 'input window, operand 1, single buffered']
    #allocation7 [shape = 's32[1]{0}', space=sflag, size = 0x4, scoped, tag = 'scoped memory for tpu_custom_call.1']
    #allocation8 [shape = 'u8[512]{0}', space=vmem, size = 0x400, scoped, tag = 'output window, operand 0, single buffered']
    %11 = vsyncpa [#allocation4], 0
    %12 = vsyncpa [#allocation7], 0
    %13 = vsyncpa [#allocation5], 0
    // Predicated region
    $region2: #{tpu_custom_call.1} parent=1 // pred_check
      _
    $region3: #{tpu_custom_call.1} parent=1 // pred_check_branch
      %15 = sbr.rel (0) target = $region5
    $region4: #{tpu_custom_call.1} parent=1 // pred_region
      %s17 = ssub.s32 128, 128
      %18 = vsyncadd [#allocation4], %s17
      %s20 = sshll.u32 [#allocation3], 4
      %s21 = int_to_ptr.vmem [resolvable:$true] %s20
      %23 = dma.hbm_to_vmem [thread:$0]  %s0, 128, %s21, [#allocation4]
    $region5: #{tpu_custom_call.1} parent=1 // pred_fallthru
      _
    // Predicated region
    $region6: #{tpu_custom_call.1} parent=1 // pred_check
      _
    $region7: #{tpu_custom_call.1} parent=1 // pred_check_branch
      %25 = sbr.rel (0) target = $region9
    $region8: #{tpu_custom_call.1} parent=1 // pred_region
      %s27 = ssub.s32 512, 512
      %28 = vsyncadd [#allocation7], %s27
      %s29 = sshll.u32 [#allocation6], 4
      %s30 = int_to_ptr.vmem [resolvable:$true] %s29
      %35 = dma.hbm_to_vmem [thread:$0]  %s1, 512, %s30, [#allocation7], 128, 128, 8
    $region9: #{tpu_custom_call.1} parent=1 // pred_fallthru
      _
    // Predicated region
    $region10: #{tpu_custom_call.1} parent=1 // pred_check
      _
    $region11: #{tpu_custom_call.1} parent=1 // pred_check_branch
      %37 = sbr.rel (0) target = $region13
    $region12: #{tpu_custom_call.1} parent=1 // pred_region
      _
    $region13: #{tpu_custom_call.1} parent=1 // pred_fallthru
      _
    // Predicated region
    $region14: #{tpu_custom_call.1} parent=1 // pred_check
      _
    $region15: #{tpu_custom_call.1} parent=1 // pred_check_branch
      %39 = sbr.rel (0) target = $region17
    $region16: #{tpu_custom_call.1} parent=1 // pred_region
      _
    $region17: #{tpu_custom_call.1} parent=1 // pred_fallthru
      _
    // Predicated region
    $region18: #{tpu_custom_call.1} parent=1 // pred_check
      _
    $region19: #{tpu_custom_call.1} parent=1 // pred_check_branch
      %41 = sbr.rel (0) target = $region21
    $region20: #{tpu_custom_call.1} parent=1 // pred_region
      _
    $region21: #{tpu_custom_call.1} parent=1 // pred_fallthru
      _
    // Predicated region
    $region22: #{tpu_custom_call.1} parent=1 // pred_check
      _
    $region23: #{tpu_custom_call.1} parent=1 // pred_check_branch
      %43 = sbr.rel (0) target = $region25
    $region24: #{tpu_custom_call.1} parent=1 // pred_region
      %44 = dma.done [#allocation4], 128
    $region25: #{tpu_custom_call.1} parent=1 // pred_fallthru
      _
    // Predicated region
    $region26: #{tpu_custom_call.1} parent=1 // pred_check
      _
    $region27: #{tpu_custom_call.1} parent=1 // pred_check_branch
      %46 = sbr.rel (0) target = $region29
    $region28: #{tpu_custom_call.1} parent=1 // pred_region
      %47 = dma.done [#allocation7], 512
    $region29: #{tpu_custom_call.1} parent=1 // pred_fallthru
      _
    %v48 = vld [vmem:[#allocation3] sm:$0xff]
    %v49 = vld [vmem:[#allocation6] sm:$0xff]
    %v50 = vld [vmem:[#allocation6 + $0x8] sm:$0xff]
    %v51 = vld [vmem:[#allocation6 + $0x10] sm:$0xff]
    %v52 = vld [vmem:[#allocation6 + $0x18] sm:$0xff]
    %v53 = vld [vmem:[%s2] sm:$0x1]
    %v55 = vlaneseq
    %v56 = vshrl.u32 %v55, 7
    %v57 = vsub.s32 0, %v56
    %v58 = vrot.slane %v53, %v57
    %vm60 = vcmask 261120
    %v62 = vsel %vm60, %v48, 0
    %64 = vmatprep.subr.mxu0 0.0
    %65 = vmatpush1.msra.mxu0 0.0
    %66 = vmatprep.subr.mxu0 0.0
    %67 = vmatpush1.msra.mxu0 0.0
    %68 = vmatprep.subr.mxu0 0.0
    %69 = vmatpush1.msra.mxu0 0.0
    %70 = vmatprep.subr.mxu0 0.0
    %71 = vmatpush1.msra.mxu0 0.0
    %72 = vmatprep.subr.mxu0 0.0
    %73 = vmatpush1.msra.mxu0 0.0
    %74 = vmatprep.subr.mxu0 0.0
    %75 = vmatpush1.msra.mxu0 0.0
    %76 = vmatprep.subr.mxu0 0.0
    %77 = vmatpush1.msra.mxu0 0.0
    %78 = vmatprep.subr.mxu0 0.0
    %79 = vmatpush1.msra.mxu0 0.0
    %80 = vmatprep.subr.mxu0 0.0
    %81 = vmatpush1.msra.mxu0 0.0
    %82 = vmatprep.subr.mxu0 0.0
    %83 = vmatpush1.msra.mxu0 0.0
    %84 = vmatprep.subr.mxu0 0.0
    %85 = vmatpush1.msra.mxu0 0.0
    %86 = vmatprep.subr.mxu0 0.0
    %87 = vmatpush1.msra.mxu0 0.0
    %88 = vmatprep.subr.mxu0 0.0
    %89 = vmatpush1.msra.mxu0 %v52
    %90 = vmatprep.subr.mxu0 0.0
    %91 = vmatpush1.msra.mxu0 %v51
    %92 = vmatprep.subr.mxu0 0.0
    %93 = vmatpush1.msra.mxu0 %v50
    %94 = vmatprep.subr.mxu0 0.0
    %95 = vmatpush1.msra.mxu0 %v49
    %96 = vmatprep.subr.mxu0 0.0
    %97 = vmatpush2.msra.mxu0 0.0
    %98 = vmatprep.subr.mxu0 0.0
    %99 = vmatpush2.msra.mxu0 0.0
    %100 = vmatprep.subr.mxu0 0.0
    %101 = vmatpush2.msra.mxu0 0.0
    %102 = vmatprep.subr.mxu0 0.0
    %103 = vmatpush2.msra.mxu0 0.0
    %104 = vmatprep.subr.mxu0 0.0
    %105 = vmatpush2.msra.mxu0 0.0
    %106 = vmatprep.subr.mxu0 0.0
    %107 = vmatpush2.msra.mxu0 0.0
    %108 = vmatprep.subr.mxu0 0.0
    %109 = vmatpush2.msra.mxu0 0.0
    %110 = vmatprep.subr.mxu0 0.0
    %111 = vmatpush2.msra.mxu0 0.0
    %112 = vmatprep.subr.mxu0 0.0
    %113 = vmatpush2.msra.mxu0 0.0
    %114 = vmatprep.subr.mxu0 0.0
    %115 = vmatpush2.msra.mxu0 0.0
    %116 = vmatprep.subr.mxu0 0.0
    %117 = vmatpush2.msra.mxu0 0.0
    %118 = vmatprep.subr.mxu0 0.0
    %119 = vmatpush2.msra.mxu0 0.0
    %120 = vmatprep.subr.mxu0 0.0
    %121 = vmatpush2.msra.mxu0 0.0
    %122 = vmatprep.subr.mxu0 0.0
    %123 = vmatpush2.msra.mxu0 0.0
    %124 = vmatprep.subr.mxu0 0.0
    %125 = vmatpush2.msra.mxu0 0.0
    %126 = vmatprep.subr.mxu0 0.0
    %127 = vmatpush2.msra.mxu0 0.0
    %128 = vmatprep.mubr.f32.mxu0 0.0
    %129 = vmatmul.mubr.f32.gmra.mxu0 %v62
    %v130 = vpop.f32.mrf.mxu0
    %v131 = vadd.f32 %v58, %v130
    %v132 = vpop.f32.mrf.mxu0
    %133 = vdwg.mxu0
    %v134 = vmax.f32 %v131, 0.0
    %v135 = vld [vmem:[%s3] sm:$0x1]
    %v137 = vlaneseq
    %v138 = vshrl.u32 %v137, 7
    %v139 = vsub.s32 0, %v138
    %v140 = vrot.slane %v135, %v139
    %v142 = vmul.f32 %v134, %v140
    %v143 = vsel %vm60, %v142, 0.0
    %144 = vadd.xlane.f32.xlu0 %v143
    %v145 = vpop.xlane.xlu0 %144
    %s146 = sld [smem:[#allocation2]]
    %v147 = vstv %s146
    %v148 = vadd.f32 %v145, %v147
    %v149 = vxor.u32 %v148, 2147483648
    %v150 = vmul.f32 %v149, 1.442695
    %v151 = vpow.pop %v150
    %v152 = vadd.f32 %v151, 1.0
    %v153 = vrcp.pop %v152
    %v154 = vmul.f32 1.0, %v153
    %v156 = vlaneseq
    %v157 = vand.u32 %v156, 127
    %v158 = vlaneseq
    %v159 = vshrl.u32 %v158, 7
    %v160 = vsub.s32 %v157, %v159
    %v161 = vrot.slane %v154, %v160
    %vm163 = vcmask 57344
    %164 = vst.msk [vmem:[#allocation8] sm:$0x1] %vm163, %v161
    // Predicated region
    $region30: #{tpu_custom_call.1} parent=1 // pred_check
      _
    $region31: #{tpu_custom_call.1} parent=1 // pred_check_branch
      %166 = sbr.rel (0) target = $region33
    $region32: #{tpu_custom_call.1} parent=1 // pred_region
      %s168 = ssub.s32 16, 16
      %169 = vsyncadd [#allocation5], %s168
      %s171 = sshll.u32 [#allocation8], 4
      %s172 = int_to_ptr.vmem [resolvable:$true] %s171
      %174 = dma.vmem_to_hbm [thread:$0]  %s172, 16, %s5, [#allocation5]
    $region33: #{tpu_custom_call.1} parent=1 // pred_fallthru
      _
    // Predicated region
    $region34: #{tpu_custom_call.1} parent=1 // pred_check
      _
    $region35: #{tpu_custom_call.1} parent=1 // pred_check_branch
      %176 = sbr.rel (0) target = $region37
    $region36: #{tpu_custom_call.1} parent=1 // pred_region
      %177 = dma.done [#allocation5], 16
    $region37: #{tpu_custom_call.1} parent=1 // pred_fallthru
      _
    %178 = vsyncpa [#allocation4], 1
    %179 = vsyncpa [#allocation7], 1
    %180 = vsyncpa [#allocation5], 1

</llo_original>
